<compile_context>
chip_gen: v6e
topology: v6e:2x2x1
jax: 0.10.0
libtpu: 0.0.40
codegen_flags: <defaults>
</compile_context>

<pallas_src>
import functools

import jax
import jax.numpy as jnp
from jax.experimental import pallas as pl
from jax.experimental.pallas import tpu as pltpu

IN_DIM = 108   # fc1 in_features
HID = 512
OUT_DIM = 1


def _round_up(x, m):
    return ((x + m - 1) // m) * m


def mlp_kernel(x_ref, w1_ref, b1_ref, w2_ref, b2_ref, w3_ref, b3_ref, o_ref):
    # x tile: (TB, IN_DIM) bf16.  Weights are bf16; accumulate in f32 on MXU.
    x = x_ref[...]

    h1 = jnp.dot(x, w1_ref[...], preferred_element_type=jnp.float32)
    h1 = jnp.maximum(h1 + b1_ref[...], 0.0)

    h2 = jnp.dot(h1.astype(jnp.bfloat16), w2_ref[...],
                 preferred_element_type=jnp.float32)
    h2 = jnp.maximum(h2 + b2_ref[...], 0.0)

    # Layer 3 has a single output column: a (TB,512)x(512,1) MXU matmul would
    # use 1/256 of the MXU, so do a VPU multiply + lane-axis (XLU) reduction.
    w3_row = w3_ref[...].astype(jnp.float32)                 # (1, HID)
    z = jnp.sum(h2 * w3_row, axis=-1, keepdims=True) + b3_ref[...]

    # Numerically stable sigmoid: exp(-|z|) (EUP) + approx reciprocal (EUP).
    ez = jnp.exp(-jnp.abs(z))
    s = pl.reciprocal(1.0 + ez, approx=True)                 # sigmoid(|z|)
    o_ref[...] = jnp.where(z >= 0.0, s, 1.0 - s)


def prepare_params(params):
    """f32 (in,out)-layout params -> kernel layout: bf16 weights, w3 as a row."""
    w1, b1, w2, b2, w3, b3 = params
    return (
        w1.astype(jnp.bfloat16),      # (IN_DIM, HID)
        b1.astype(jnp.float32),       # (1, HID)
        w2.astype(jnp.bfloat16),      # (HID, HID)
        b2.astype(jnp.float32),       # (1, HID)
        w3.T.astype(jnp.bfloat16),    # (1, HID)  row vector for the VPU layer-3 path
        b3.astype(jnp.float32),       # (1, OUT_DIM)
    )


@functools.partial(jax.jit, static_argnames=("block_b",))
def starting_network_forward(x, params, *, block_b=1024):
    w1, b1, w2, b2, w3, b3 = prepare_params(params)

    B = x.shape[0]

    # Batch tile: multiple of 16 (bf16 sublane packing).  Target ~cdiv(B,2) so
    # there are >= 2 grid steps (v7x megacore split across TensorCores) when B
    # is large enough; cap at block_b so f32 intermediates stay a few MiB.
    tb = min(block_b, _round_up(pl.cdiv(B, 2), 16))
    bp = _round_up(B, tb)

    # Single fused pad+cast: x crosses HBM once, already in bf16.
    xp = jnp.zeros((bp, IN_DIM), jnp.bfloat16).at[:B, :].set(
        x.astype(jnp.bfloat16))

    grid = (bp // tb,)
    const = lambda i: (0, 0)  # weights/biases: same block every step -> VMEM-resident

    out = pl.pallas_call(
        mlp_kernel,
        out_shape=jax.ShapeDtypeStruct((bp, OUT_DIM), jnp.float32),
        grid=grid,
        in_specs=[
            pl.BlockSpec((tb, IN_DIM), lambda i: (i, 0)),    # x tile (bf16), pipelined
            pl.BlockSpec((IN_DIM, HID), const),              # W1 (bf16)
            pl.BlockSpec((1, HID), const),                   # b1
            pl.BlockSpec((HID, HID), const),                 # W2 (bf16)
            pl.BlockSpec((1, HID), const),                   # b2
            pl.BlockSpec((1, HID), const),                   # W3 row (bf16)
            pl.BlockSpec((1, OUT_DIM), const),               # b3
        ],
        out_specs=pl.BlockSpec((tb, OUT_DIM), lambda i: (i, 0)),
        compiler_params=pltpu.CompilerParams(
            dimension_semantics=("parallel",),
            vmem_limit_bytes=32 * 1024 * 1024),
    )(xp, w1, b1, w2, b2, w3, b3)

    return out[:B]


def reference_forward(x, params):
    # Pure-f32 reference matching the original PyTorch module's semantics
    # (the kernel's bf16 weights/inputs + approx reciprocal are the only
    # intentional deviations; tolerance below covers them).
    w1, b1, w2, b2, w3, b3 = params
    h = jnp.maximum(x.astype(jnp.float32) @ w1 + b1, 0.0)
    h = jnp.maximum(h @ w2 + b2, 0.0)
    return jax.nn.sigmoid(h @ w3 + b3)


def init_params(key):
    # Deterministic init mimicking nn.Linear's uniform(-1/sqrt(fan_in), ...),
    # stored as (in_dim, out_dim) f32 (transposed vs PyTorch's weight layout).
    k1, k2, k3, k4, k5, k6 = jax.random.split(key, 6)

    def uniform(k, shape, fan_in):
        bound = 1.0 / jnp.sqrt(fan_in)
        return jax.random.uniform(k, shape, jnp.float32, -bound, bound)

    w1 = uniform(k1, (IN_DIM, HID), IN_DIM)
    b1 = uniform(k2, (1, HID), IN_DIM)
    w2 = uniform(k3, (HID, HID), HID)
    b2 = uniform(k4, (1, HID), HID)
    w3 = uniform(k5, (HID, OUT_DIM), HID)
    b3 = uniform(k6, (1, OUT_DIM), HID)
    return (w1, b1, w2, b2, w3, b3)


if __name__ == "__main__":
    key = jax.random.PRNGKey(0)
    pkey, xkey = jax.random.split(key)
    params = init_params(pkey)

    # B=8  -> single grid step; B=300 -> 2-step grid + batch-tile padding.
    for B in (8, 300):
        x = jax.random.normal(jax.random.fold_in(xkey, B), (B, IN_DIM),
                              dtype=jnp.float32)
        out = jax.block_until_ready(starting_network_forward(x, params))
        ref = reference_forward(x, params)
        assert out.shape == (B, OUT_DIM)
        assert jnp.allclose(out, ref, atol=2e-2, rtol=0.0), (
            f"mismatch at B={B}: max err {jnp.max(jnp.abs(out - ref))}")

    print("KERNEL_OK")
</pallas_src>

<mosaic_0001>
module attributes {stable_mosaic.version = 11 : i64} {
  func.func @mlp_kernel(%arg0: i32, %arg1: memref<16x108xbf16, #tpu.memory_space<vmem>>, %arg2: memref<108x512xbf16, #tpu.memory_space<vmem>>, %arg3: memref<1x512xf32, #tpu.memory_space<vmem>>, %arg4: memref<512x512xbf16, #tpu.memory_space<vmem>>, %arg5: memref<1x512xf32, #tpu.memory_space<vmem>>, %arg6: memref<1x512xbf16, #tpu.memory_space<vmem>>, %arg7: memref<1x1xf32, #tpu.memory_space<vmem>>, %arg8: memref<16x1xf32, #tpu.memory_space<vmem>>) attributes {dimension_semantics = [#tpu.dimension_semantics<parallel>], iteration_bounds = array<i64: 1>, scalar_prefetch = 0 : i64, scratch_operands = 0 : i64, tpu.core_type = #tpu.core_type<tc>, window_params = [{transform_indices = @transform_0, window_bounds = array<i64: 16, 108>}, {pipeline_mode = #tpu.pipeline_mode<synchronous>, transform_indices = @transform_1, window_bounds = array<i64: 108, 512>}, {pipeline_mode = #tpu.pipeline_mode<synchronous>, transform_indices = @transform_2, window_bounds = array<i64: 1, 512>}, {pipeline_mode = #tpu.pipeline_mode<synchronous>, transform_indices = @transform_3, window_bounds = array<i64: 512, 512>}, {pipeline_mode = #tpu.pipeline_mode<synchronous>, transform_indices = @transform_4, window_bounds = array<i64: 1, 512>}, {pipeline_mode = #tpu.pipeline_mode<synchronous>, transform_indices = @transform_5, window_bounds = array<i64: 1, 512>}, {pipeline_mode = #tpu.pipeline_mode<synchronous>, transform_indices = @transform_6, window_bounds = array<i64: 1, 1>}, {transform_indices = @transform_7, window_bounds = array<i64: 16, 1>}]} {
    %c0 = arith.constant 0 : index
    %c0_0 = arith.constant 0 : index
    %0 = vector.load %arg1[%c0, %c0_0] : memref<16x108xbf16, #tpu.memory_space<vmem>>, vector<16x108xbf16>
    %c0_1 = arith.constant 0 : index
    %c0_2 = arith.constant 0 : index
    %1 = vector.load %arg2[%c0_1, %c0_2] : memref<108x512xbf16, #tpu.memory_space<vmem>>, vector<108x512xbf16>
    %cst = arith.constant dense<0.000000e+00> : vector<16x512xf32>
    %2 = tpu.matmul %0, %1, %cst {dimension_numbers = #tpu.dot_dimension_numbers<[1], [0], [0], [1], [0, 0, 1, 1], [], []>} : vector<16x108xbf16>, vector<108x512xbf16>, vector<16x512xf32> -> vector<16x512xf32>
    %c0_3 = arith.constant 0 : index
    %c0_4 = arith.constant 0 : index
    %3 = vector.load %arg3[%c0_3, %c0_4] : memref<1x512xf32, #tpu.memory_space<vmem>>, vector<1x512xf32>
    %4 = vector.broadcast %3 : vector<1x512xf32> to vector<16x512xf32>
    %5 = arith.addf %2, %4 : vector<16x512xf32>
    %cst_5 = arith.constant 0.000000e+00 : f32
    %6 = vector.broadcast %cst_5 : f32 to vector<16x512xf32>
    %7 = arith.maximumf %5, %6 : vector<16x512xf32>
    %8 = arith.truncf %7 : vector<16x512xf32> to vector<16x512xbf16>
    %c0_6 = arith.constant 0 : index
    %c0_7 = arith.constant 0 : index
    %9 = vector.load %arg4[%c0_6, %c0_7] : memref<512x512xbf16, #tpu.memory_space<vmem>>, vector<512x512xbf16>
    %cst_8 = arith.constant dense<0.000000e+00> : vector<16x512xf32>
    %10 = tpu.matmul %8, %9, %cst_8 {dimension_numbers = #tpu.dot_dimension_numbers<[1], [0], [0], [1], [0, 0, 1, 1], [], []>} : vector<16x512xbf16>, vector<512x512xbf16>, vector<16x512xf32> -> vector<16x512xf32>
    %c0_9 = arith.constant 0 : index
    %c0_10 = arith.constant 0 : index
    %11 = vector.load %arg5[%c0_9, %c0_10] : memref<1x512xf32, #tpu.memory_space<vmem>>, vector<1x512xf32>
    %12 = vector.broadcast %11 : vector<1x512xf32> to vector<16x512xf32>
    %13 = arith.addf %10, %12 : vector<16x512xf32>
    %cst_11 = arith.constant 0.000000e+00 : f32
    %14 = vector.broadcast %cst_11 : f32 to vector<16x512xf32>
    %15 = arith.maximumf %13, %14 : vector<16x512xf32>
    %c0_12 = arith.constant 0 : index
    %c0_13 = arith.constant 0 : index
    %16 = vector.load %arg6[%c0_12, %c0_13] : memref<1x512xbf16, #tpu.memory_space<vmem>>, vector<1x512xbf16>
    %17 = arith.extf %16 : vector<1x512xbf16> to vector<1x512xf32>
    %18 = vector.broadcast %17 : vector<1x512xf32> to vector<16x512xf32>
    %19 = arith.mulf %15, %18 : vector<16x512xf32>
    %cst_14 = arith.constant dense<0.000000e+00> : vector<16xf32>
    %20 = vector.multi_reduction <add>, %19, %cst_14 [1] : vector<16x512xf32> to vector<16xf32>
    %21 = vector.shape_cast %20 : vector<16xf32> to vector<16x1xf32>
    %c0_15 = arith.constant 0 : index
    %c0_16 = arith.constant 0 : index
    %22 = vector.load %arg7[%c0_15, %c0_16] : memref<1x1xf32, #tpu.memory_space<vmem>>, vector<1x1xf32>
    %23 = vector.broadcast %22 : vector<1x1xf32> to vector<16x1xf32>
    %24 = arith.addf %21, %23 : vector<16x1xf32>
    %25 = math.absf %24 : vector<16x1xf32>
    %cst_17 = arith.constant 0.000000e+00 : f32
    %26 = vector.broadcast %cst_17 : f32 to vector<16x1xf32>
    %27 = arith.subf %26, %25 : vector<16x1xf32>
    %28 = math.exp %27 : vector<16x1xf32>
    %cst_18 = arith.constant 1.000000e+00 : f32
    %29 = vector.broadcast %cst_18 : f32 to vector<16x1xf32>
    %30 = arith.addf %29, %28 : vector<16x1xf32>
    %31 = tpu.reciprocal %30 {approx = true} : vector<16x1xf32> -> vector<16x1xf32>
    %cst_19 = arith.constant 0.000000e+00 : f32
    %32 = vector.broadcast %cst_19 : f32 to vector<16x1xf32>
    %33 = arith.cmpf oge, %24, %32 : vector<16x1xf32>
    %cst_20 = arith.constant 1.000000e+00 : f32
    %34 = vector.broadcast %cst_20 : f32 to vector<16x1xf32>
    %35 = arith.subf %34, %31 : vector<16x1xf32>
    %36 = arith.select %33, %31, %35 : vector<16x1xi1>, vector<16x1xf32>
    %c0_21 = arith.constant 0 : index
    %c0_22 = arith.constant 0 : index
    %37 = vector.load %arg8[%c0_21, %c0_22] : memref<16x1xf32, #tpu.memory_space<vmem>>, vector<16x1xf32>
    tpu.vector_store %arg8[%c0_21, %c0_22], %36 {strides = array<i32>} : memref<16x1xf32, #tpu.memory_space<vmem>>, vector<16x1xf32>,
    return
  }
  func.func @transform_0(%arg0: i32) -> (i32, i32) {
    %c0_i32 = arith.constant 0 : i32
    %c0_i32_0 = arith.constant 0 : i32
    return %arg0, %c0_i32 : i32, i32
  }
  func.func @transform_1(%arg0: i32) -> (i32, i32) {
    %c0_i32 = arith.constant 0 : i32
    %c0_i32_0 = arith.constant 0 : i32
    %c0_i32_1 = arith.constant 0 : i32
    return %c0_i32, %c0_i32_0 : i32, i32
  }
  func.func @transform_2(%arg0: i32) -> (i32, i32) {
    %c0_i32 = arith.constant 0 : i32
    %c0_i32_0 = arith.constant 0 : i32
    %c0_i32_1 = arith.constant 0 : i32
    return %c0_i32, %c0_i32_0 : i32, i32
  }
  func.func @transform_3(%arg0: i32) -> (i32, i32) {
    %c0_i32 = arith.constant 0 : i32
    %c0_i32_0 = arith.constant 0 : i32
    %c0_i32_1 = arith.constant 0 : i32
    return %c0_i32, %c0_i32_0 : i32, i32
  }
  func.func @transform_4(%arg0: i32) -> (i32, i32) {
    %c0_i32 = arith.constant 0 : i32
    %c0_i32_0 = arith.constant 0 : i32
    %c0_i32_1 = arith.constant 0 : i32
    return %c0_i32, %c0_i32_0 : i32, i32
  }
  func.func @transform_5(%arg0: i32) -> (i32, i32) {
    %c0_i32 = arith.constant 0 : i32
    %c0_i32_0 = arith.constant 0 : i32
    %c0_i32_1 = arith.constant 0 : i32
    return %c0_i32, %c0_i32_0 : i32, i32
  }
  func.func @transform_6(%arg0: i32) -> (i32, i32) {
    %c0_i32 = arith.constant 0 : i32
    %c0_i32_0 = arith.constant 0 : i32
    %c0_i32_1 = arith.constant 0 : i32
    return %c0_i32, %c0_i32_0 : i32, i32
  }
  func.func @transform_7(%arg0: i32) -> (i32, i32) {
    %c0_i32 = arith.constant 0 : i32
    %c0_i32_0 = arith.constant 0 : i32
    return %arg0, %c0_i32 : i32, i32
  }
}

</mosaic_0001>

<llo_original>
// kernel: starting_network_forward.1
$region0: #{starting_network_forward.1}
  #allocation0 [shape = 'u32[]', space=smem, size = 0x4, offset = 0x4, fixed_abs, tag = 'smem constant byte address 0x4 - core index']
  #allocation1 [shape = 'u32[144,128]{1,0:T(1,128)}', space=vmem, size = 0x12000, scoped, tag = 'internal scratch']
  #allocation2 [shape = 'f32[1,1]{1,0:T(1,128)S(1)}', space=vmem, size = 0x200, scoped, tag = 'scoped memory for starting_network_forward.1']
  %s0 = inlined_call_operand.vmem [shape: bf16[16,108], index: 0, kind: input, shape index: {}]
  %s1 = inlined_call_operand.vmem [shape: bf16[108,512], index: 1, kind: input, shape index: {}]
  %s2 = inlined_call_operand.vmem [shape: f32[1,512], index: 2, kind: input, shape index: {}]
  %s3 = inlined_call_operand.vmem [shape: bf16[512,512], index: 3, kind: input, shape index: {}]
  %s4 = inlined_call_operand.vmem [shape: f32[1,512], index: 4, kind: input, shape index: {}]
  %s5 = inlined_call_operand.vmem [shape: bf16[1,512], index: 5, kind: input, shape index: {}]
  %s6 = inlined_call_operand.<no memory space> [shape: f32[1,1], index: 6, kind: input, shape index: {}]
  %s7 = inlined_call_operand.vmem [shape: f32[16,1], index: 7, kind: output, shape index: {}]
  %s8 = sld [smem:[#allocation0]]
  $region38: #{starting_network_forward.1} parent=0
    _
  %s10 = ssub.s32 1, %s8
  %s11 = scalar_select 0, %s10, %s8
  %v12 = vstv %s6
  %13 = vst [vmem:[#allocation2] sm:$0x1] %v12
  // Predicated region
  $region2: #{starting_network_forward.1} parent=0 // pred_check
    _
  $region3: #{starting_network_forward.1} parent=0 // pred_check_branch
    %15 = sbr.rel (0) target = $region5
  $region4: #{starting_network_forward.1} parent=0 // pred_region
    _
  $region5: #{starting_network_forward.1} parent=0 // pred_fallthru
    _
  // Predicated region
  $region6: #{starting_network_forward.1} parent=0 // pred_check
    _
  $region7: #{starting_network_forward.1} parent=0 // pred_check_branch
    %17 = sbr.rel (0) target = $region9
  $region8: #{starting_network_forward.1} parent=0 // pred_region
    _
  $region9: #{starting_network_forward.1} parent=0 // pred_fallthru
    _
  // Predicated region
  $region10: #{starting_network_forward.1} parent=0 // pred_check
    _
  $region11: #{starting_network_forward.1} parent=0 // pred_check_branch
    %19 = sbr.rel (0) target = $region13
  $region12: #{starting_network_forward.1} parent=0 // pred_region
    _
  $region13: #{starting_network_forward.1} parent=0 // pred_fallthru
    _
  // Predicated region
  $region14: #{starting_network_forward.1} parent=0 // pred_check
    _
  $region15: #{starting_network_forward.1} parent=0 // pred_check_branch
    %21 = sbr.rel (0) target = $region17
  $region16: #{starting_network_forward.1} parent=0 // pred_region
    _
  $region17: #{starting_network_forward.1} parent=0 // pred_fallthru
    _
  // Predicated region
  $region18: #{starting_network_forward.1} parent=0 // pred_check
    _
  $region19: #{starting_network_forward.1} parent=0 // pred_check_branch
    %23 = sbr.rel (0) target = $region21
  $region20: #{starting_network_forward.1} parent=0 // pred_region
    _
  $region21: #{starting_network_forward.1} parent=0 // pred_fallthru
    _
  // Predicated region
  $region22: #{starting_network_forward.1} parent=0 // pred_check
    _
  $region23: #{starting_network_forward.1} parent=0 // pred_check_branch
    %25 = sbr.rel (0) target = $region25
  $region24: #{starting_network_forward.1} parent=0 // pred_region
    _
  $region25: #{starting_network_forward.1} parent=0 // pred_fallthru
    _
  // Predicated region
  $region26: #{starting_network_forward.1} parent=0 // pred_check
    _
  $region27: #{starting_network_forward.1} parent=0 // pred_check_branch
    %27 = sbr.rel (0) target = $region29
  $region28: #{starting_network_forward.1} parent=0 // pred_region
    _
  $region29: #{starting_network_forward.1} parent=0 // pred_fallthru
    _
  %v29 = vld [vmem:[%s0] sm:$0xf]
  %v30 = vld [vmem:[%s0 + $0x4] sm:$0xf]
  %v31 = vld [vmem:[%s1] sm:$0xff]
  %v32 = vld [vmem:[%s1 + $0x8] sm:$0xff]
  %v33 = vld [vmem:[%s1 + $0x10] sm:$0xff]
  %v34 = vld [vmem:[%s1 + $0x18] sm:$0xff]
  %v35 = vld [vmem:[%s1 + $0x20] sm:$0xff]
  %v36 = vld [vmem:[%s1 + $0x28] sm:$0xff]
  %v37 = vld [vmem:[%s1 + $0x30] sm:$0xff]
  %v38 = vld [vmem:[%s1 + $0x38] sm:$0xff]
  %v39 = vld [vmem:[%s1 + $0x40] sm:$0xff]
  %v40 = vld [vmem:[%s1 + $0x48] sm:$0xff]
  %v41 = vld [vmem:[%s1 + $0x50] sm:$0xff]
  %v42 = vld [vmem:[%s1 + $0x58] sm:$0xff]
  %v43 = vld [vmem:[%s1 + $0x60] sm:$0xff]
  %v44 = vld [vmem:[%s1 + $0x68] sm:$0xff]
  %v45 = vld [vmem:[%s1 + $0x70] sm:$0xff]
  %v46 = vld [vmem:[%s1 + $0x78] sm:$0xff]
  %v47 = vld [vmem:[%s1 + $0x80] sm:$0xff]
  %v48 = vld [vmem:[%s1 + $0x88] sm:$0xff]
  %v49 = vld [vmem:[%s1 + $0x90] sm:$0xff]
  %v50 = vld [vmem:[%s1 + $0x98] sm:$0xff]
  %v51 = vld [vmem:[%s1 + $0xa0] sm:$0xff]
  %v52 = vld [vmem:[%s1 + $0xa8] sm:$0xff]
  %v53 = vld [vmem:[%s1 + $0xb0] sm:$0xff]
  %v54 = vld [vmem:[%s1 + $0xb8] sm:$0xff]
  %v55 = vld [vmem:[%s1 + $0xc0] sm:$0xff]
  %v56 = vld [vmem:[%s1 + $0xc8] sm:$0xff]
  %v57 = vld [vmem:[%s1 + $0xd0] sm:$0x33]
  %v58 = vld [vmem:[%s1 + $0xd8] sm:$0x33]
  %v59 = vld [vmem:[%s2] sm:$0xf]
  %v61 = vlaneseq
  %v62 = vshrl.u32 %v61, 7
  %v63 = vsub.s32 0, %v62
  %v64 = vrot.slane %v59, %v63
  %v65 = vlaneseq
  %v66 = vshrl.u32 %v65, 7
  %v67 = vsub.s32 1, %v66
  %v68 = vrot.slane %v59, %v67
  %v69 = vlaneseq
  %v70 = vshrl.u32 %v69, 7
  %v71 = vsub.s32 2, %v70
  %v72 = vrot.slane %v59, %v71
  %v73 = vlaneseq
  %v74 = vshrl.u32 %v73, 7
  %v75 = vsub.s32 3, %v74
  %v76 = vrot.slane %v59, %v75
  %v83 = vunpack.c.l.b16 %v29
  %v84 = vunpack.c.l.b16 %v30
  %v85 = vpack.c.b16 %v84, %v83
  %v114 = vunpack.c.l.b16 %v31
  %v115 = vunpack.c.h.b16 %v31
  %v116 = vunpack.c.l.b16 %v32
  %v117 = vunpack.c.h.b16 %v32
  %v118 = vunpack.c.l.b16 %v33
  %v119 = vunpack.c.h.b16 %v33
  %v120 = vunpack.c.l.b16 %v34
  %v121 = vunpack.c.h.b16 %v34
  %v122 = vunpack.c.l.b16 %v35
  %v123 = vunpack.c.h.b16 %v35
  %v124 = vunpack.c.l.b16 %v36
  %v125 = vunpack.c.h.b16 %v36
  %v126 = vunpack.c.l.b16 %v37
  %v127 = vunpack.c.h.b16 %v37
  %v128 = vunpack.c.l.b16 %v38
  %v129 = vunpack.c.h.b16 %v38
  %v130 = vunpack.c.l.b16 %v39
  %v131 = vunpack.c.h.b16 %v39
  %v132 = vunpack.c.l.b16 %v40
  %v133 = vunpack.c.h.b16 %v40
  %v134 = vunpack.c.l.b16 %v41
  %v135 = vunpack.c.h.b16 %v41
  %v136 = vunpack.c.l.b16 %v42
  %v137 = vunpack.c.h.b16 %v42
  %v138 = vunpack.c.l.b16 %v43
  %v139 = vunpack.c.h.b16 %v43
  %v140 = vunpack.c.l.b16 %v44
  %v141 = vunpack.c.h.b16 %v44
  %v142 = vunpack.c.l.b16 %v45
  %v143 = vunpack.c.h.b16 %v45
  %v144 = vunpack.c.l.b16 %v46
  %v145 = vunpack.c.h.b16 %v46
  %v146 = vunpack.c.l.b16 %v47
  %v147 = vunpack.c.h.b16 %v47
  %v148 = vunpack.c.l.b16 %v48
  %v149 = vunpack.c.h.b16 %v48
  %v150 = vunpack.c.l.b16 %v49
  %v151 = vunpack.c.h.b16 %v49
  %v152 = vunpack.c.l.b16 %v50
  %v153 = vunpack.c.h.b16 %v50
  %v154 = vunpack.c.l.b16 %v51
  %v155 = vunpack.c.h.b16 %v51
  %v156 = vunpack.c.l.b16 %v52
  %v157 = vunpack.c.h.b16 %v52
  %v158 = vunpack.c.l.b16 %v53
  %v159 = vunpack.c.h.b16 %v53
  %v160 = vunpack.c.l.b16 %v54
  %v161 = vunpack.c.h.b16 %v54
  %v162 = vunpack.c.l.b16 %v55
  %v163 = vunpack.c.h.b16 %v55
  %v164 = vunpack.c.l.b16 %v56
  %v165 = vunpack.c.h.b16 %v56
  %v166 = vunpack.c.l.b16 %v57
  %v167 = vunpack.c.h.b16 %v57
  %v168 = vunpack.c.l.b16 %v58
  %v169 = vunpack.c.h.b16 %v58
  %v170 = vpack.c.b16 %v118, %v114
  %v171 = vpack.c.b16 %v119, %v115
  %v172 = vpack.c.b16 %v120, %v116
  %v173 = vpack.c.b16 %v121, %v117
  %v174 = vpack.c.b16 %v126, %v122
  %v175 = vpack.c.b16 %v127, %v123
  %v176 = vpack.c.b16 %v128, %v124
  %v177 = vpack.c.b16 %v129, %v125
  %v178 = vpack.c.b16 %v134, %v130
  %v179 = vpack.c.b16 %v135, %v131
  %v180 = vpack.c.b16 %v136, %v132
  %v181 = vpack.c.b16 %v137, %v133
  %v182 = vpack.c.b16 %v142, %v138
  %v183 = vpack.c.b16 %v143, %v139
  %v184 = vpack.c.b16 %v144, %v140
  %v185 = vpack.c.b16 %v145, %v141
  %v186 = vpack.c.b16 %v150, %v146
  %v187 = vpack.c.b16 %v151, %v147
  %v188 = vpack.c.b16 %v152, %v148
  %v189 = vpack.c.b16 %v153, %v149
  %v190 = vpack.c.b16 %v158, %v154
  %v191 = vpack.c.b16 %v159, %v155
  %v192 = vpack.c.b16 %v160, %v156
  %v193 = vpack.c.b16 %v161, %v157
  %v194 = vpack.c.b16 %v166, %v162
  %v195 = vpack.c.b16 %v167, %v163
  %v196 = vpack.c.b16 %v168, %v164
  %v197 = vpack.c.b16 %v169, %v165
  %vm222 = vcmask 883712
  %v224 = vsel %vm222, %v85, 0
  %vm226 = vcmask 1045504
  %v228 = vsel %vm226, %v194, 0
  %v231 = vsel %vm226, %v195, 0
  %v234 = vsel %vm226, %v196, 0
  %v237 = vsel %vm226, %v197, 0
  %239 = vmatprep.subr.bf16.mxu0 0
  %240 = vmatpush1.bf16.msra.mxu0 0
  %241 = vmatprep.subr.bf16.mxu0 %v231
  %242 = vmatpush1.bf16.msra.mxu0 %v228
  %243 = vmatprep.subr.bf16.mxu0 %v191
  %244 = vmatpush1.bf16.msra.mxu0 %v190
  %245 = vmatprep.subr.bf16.mxu0 %v187
  %246 = vmatpush1.bf16.msra.mxu0 %v186
  %247 = vmatprep.subr.bf16.mxu0 %v183
  %248 = vmatpush1.bf16.msra.mxu0 %v182
  %249 = vmatprep.subr.bf16.mxu0 %v179
  %250 = vmatpush1.bf16.msra.mxu0 %v178
  %251 = vmatprep.subr.bf16.mxu0 %v175
  %252 = vmatpush1.bf16.msra.mxu0 %v174
  %253 = vmatprep.subr.bf16.mxu0 %v171
  %254 = vmatpush1.bf16.msra.mxu0 %v170
  %255 = vmatprep.subr.bf16.mxu0 0
  %256 = vmatpush2.bf16.msra.mxu0 0
  %257 = vmatprep.subr.bf16.mxu0 0
  %258 = vmatpush2.bf16.msra.mxu0 0
  %259 = vmatprep.subr.bf16.mxu0 0
  %260 = vmatpush2.bf16.msra.mxu0 0
  %261 = vmatprep.subr.bf16.mxu0 0
  %262 = vmatpush2.bf16.msra.mxu0 0
  %263 = vmatprep.subr.bf16.mxu0 0
  %264 = vmatpush2.bf16.msra.mxu0 0
  %265 = vmatprep.subr.bf16.mxu0 0
  %266 = vmatpush2.bf16.msra.mxu0 0
  %267 = vmatprep.subr.bf16.mxu0 0
  %268 = vmatpush2.bf16.msra.mxu0 0
  %269 = vmatprep.subr.bf16.mxu0 0
  %270 = vmatpush2.bf16.msra.mxu0 0
  %271 = vmatprep.mubr.bf16.mxu0 0
  %272 = vmatmul.mubr.bf16.gmra.mxu0 %v224
  %v273 = vpop.f32.mrf.mxu0
  %v274 = vadd.f32 %v64, %v273
  %v275 = vpop.f32.mrf.mxu0
  %v276 = vadd.f32 %v68, %v275
  %v277 = vpop.f32.mrf.mxu0
  %v278 = vadd.f32 %v64, %v277
  %v279 = vpop.f32.mrf.mxu0
  %v280 = vadd.f32 %v68, %v279
  %281 = vdwg.mxu0
  %282 = vmatprep.subr.bf16.mxu0 0
  %283 = vmatpush1.bf16.msra.mxu0 0
  %284 = vmatprep.subr.bf16.mxu0 %v237
  %285 = vmatpush1.bf16.msra.mxu0 %v234
  %286 = vmatprep.subr.bf16.mxu0 %v193
  %287 = vmatpush1.bf16.msra.mxu0 %v192
  %288 = vmatprep.subr.bf16.mxu0 %v189
  %289 = vmatpush1.bf16.msra.mxu0 %v188
  %290 = vmatprep.subr.bf16.mxu0 %v185
  %291 = vmatpush1.bf16.msra.mxu0 %v184
  %292 = vmatprep.subr.bf16.mxu0 %v181
  %293 = vmatpush1.bf16.msra.mxu0 %v180
  %294 = vmatprep.subr.bf16.mxu0 %v177
  %295 = vmatpush1.bf16.msra.mxu0 %v176
  %296 = vmatprep.subr.bf16.mxu0 %v173
  %297 = vmatpush1.bf16.msra.mxu0 %v172
  %298 = vmatprep.subr.bf16.mxu0 0
  %299 = vmatpush2.bf16.msra.mxu0 0
  %300 = vmatprep.subr.bf16.mxu0 0
  %301 = vmatpush2.bf16.msra.mxu0 0
  %302 = vmatprep.subr.bf16.mxu0 0
  %303 = vmatpush2.bf16.msra.mxu0 0
  %304 = vmatprep.subr.bf16.mxu0 0
  %305 = vmatpush2.bf16.msra.mxu0 0
  %306 = vmatprep.subr.bf16.mxu0 0
  %307 = vmatpush2.bf16.msra.mxu0 0
  %308 = vmatprep.subr.bf16.mxu0 0
  %309 = vmatpush2.bf16.msra.mxu0 0
  %310 = vmatprep.subr.bf16.mxu0 0
  %311 = vmatpush2.bf16.msra.mxu0 0
  %312 = vmatprep.subr.bf16.mxu0 0
  %313 = vmatpush2.bf16.msra.mxu0 0
  %314 = vmatprep.mubr.bf16.mxu0 0
  %315 = vmatmul.mubr.bf16.gmra.mxu0 %v224
  %v316 = vpop.f32.mrf.mxu0
  %v317 = vadd.f32 %v72, %v316
  %v318 = vpop.f32.mrf.mxu0
  %v319 = vadd.f32 %v76, %v318
  %v320 = vpop.f32.mrf.mxu0
  %v321 = vadd.f32 %v72, %v320
  %v322 = vpop.f32.mrf.mxu0
  %v323 = vadd.f32 %v76, %v322
  %324 = vdwg.mxu0
  %v325 = vmax.f32 %v274, 0.0
  %v326 = vmax.f32 %v276, 0.0
  %v327 = vmax.f32 %v317, 0.0
  %v328 = vmax.f32 %v319, 0.0
  %v329 = vmax.f32 %v278, 0.0
  %v330 = vmax.f32 %v280, 0.0
  %v331 = vmax.f32 %v321, 0.0
  %v332 = vmax.f32 %v323, 0.0
  %v333 = vpack.c.bf16 %v329, %v325
  %v334 = vpack.c.bf16 %v330, %v326
  %v335 = vpack.c.bf16 %v331, %v327
  %v336 = vpack.c.bf16 %v332, %v328
  %v337 = vld [vmem:[%s3] sm:$0xff]
  %v338 = vld [vmem:[%s3 + $0x8] sm:$0xff]
  %v339 = vld [vmem:[%s3 + $0x10] sm:$0xff]
  %v340 = vld [vmem:[%s3 + $0x18] sm:$0xff]
  %v341 = vld [vmem:[%s3 + $0x20] sm:$0xff]
  %v342 = vld [vmem:[%s3 + $0x28] sm:$0xff]
  %v343 = vld [vmem:[%s3 + $0x30] sm:$0xff]
  %v344 = vld [vmem:[%s3 + $0x38] sm:$0xff]
  %v345 = vld [vmem:[%s3 + $0x40] sm:$0xff]
  %v346 = vld [vmem:[%s3 + $0x48] sm:$0xff]
  %v347 = vld [vmem:[%s3 + $0x50] sm:$0xff]
  %v348 = vld [vmem:[%s3 + $0x58] sm:$0xff]
  %v349 = vld [vmem:[%s3 + $0x60] sm:$0xff]
  %v350 = vld [vmem:[%s3 + $0x68] sm:$0xff]
  %v351 = vld [vmem:[%s3 + $0x70] sm:$0xff]
  %v352 = vld [vmem:[%s3 + $0x78] sm:$0xff]
  %v353 = vld [vmem:[%s3 + $0x80] sm:$0xff]
  %v354 = vld [vmem:[%s3 + $0x88] sm:$0xff]
  %v355 = vld [vmem:[%s3 + $0x90] sm:$0xff]
  %v356 = vld [vmem:[%s3 + $0x98] sm:$0xff]
  %v357 = vld [vmem:[%s3 + $0xa0] sm:$0xff]
  %v358 = vld [vmem:[%s3 + $0xa8] sm:$0xff]
  %v359 = vld [vmem:[%s3 + $0xb0] sm:$0xff]
  %v360 = vld [vmem:[%s3 + $0xb8] sm:$0xff]
  %v361 = vld [vmem:[%s3 + $0xc0] sm:$0xff]
  %v362 = vld [vmem:[%s3 + $0xc8] sm:$0xff]
  %v363 = vld [vmem:[%s3 + $0xd0] sm:$0xff]
  %v364 = vld [vmem:[%s3 + $0xd8] sm:$0xff]
  %v365 = vld [vmem:[%s3 + $0xe0] sm:$0xff]
  %v366 = vld [vmem:[%s3 + $0xe8] sm:$0xff]
  %v367 = vld [vmem:[%s3 + $0xf0] sm:$0xff]
  %v368 = vld [vmem:[%s3 + $0xf8] sm:$0xff]
  %v369 = vld [vmem:[%s3 + $0x100] sm:$0xff]
  %v370 = vld [vmem:[%s3 + $0x108] sm:$0xff]
  %v371 = vld [vmem:[%s3 + $0x110] sm:$0xff]
  %v372 = vld [vmem:[%s3 + $0x118] sm:$0xff]
  %v373 = vld [vmem:[%s3 + $0x120] sm:$0xff]
  %v374 = vld [vmem:[%s3 + $0x128] sm:$0xff]
  %v375 = vld [vmem:[%s3 + $0x130] sm:$0xff]
  %v376 = vld [vmem:[%s3 + $0x138] sm:$0xff]
  %v377 = vld [vmem:[%s3 + $0x140] sm:$0xff]
  %v378 = vld [vmem:[%s3 + $0x148] sm:$0xff]
  %v379 = vld [vmem:[%s3 + $0x150] sm:$0xff]
  %v380 = vld [vmem:[%s3 + $0x158] sm:$0xff]
  %v381 = vld [vmem:[%s3 + $0x160] sm:$0xff]
  %v382 = vld [vmem:[%s3 + $0x168] sm:$0xff]
  %v383 = vld [vmem:[%s3 + $0x170] sm:$0xff]
  %v384 = vld [vmem:[%s3 + $0x178] sm:$0xff]
  %v385 = vld [vmem:[%s3 + $0x180] sm:$0xff]
  %v386 = vld [vmem:[%s3 + $0x188] sm:$0xff]
  %v387 = vld [vmem:[%s3 + $0x190] sm:$0xff]
  %v388 = vld [vmem:[%s3 + $0x198] sm:$0xff]
  %v389 = vld [vmem:[%s3 + $0x1a0] sm:$0xff]
  %v390 = vld [vmem:[%s3 + $0x1a8] sm:$0xff]
  %v391 = vld [vmem:[%s3 + $0x1b0] sm:$0xff]
  %v392 = vld [vmem:[%s3 + $0x1b8] sm:$0xff]
  %v393 = vld [vmem:[%s3 + $0x1c0] sm:$0xff]
  %v394 = vld [vmem:[%s3 + $0x1c8] sm:$0xff]
  %v395 = vld [vmem:[%s3 + $0x1d0] sm:$0xff]
  %v396 = vld [vmem:[%s3 + $0x1d8] sm:$0xff]
  %v397 = vld [vmem:[%s3 + $0x1e0] sm:$0xff]
  %v398 = vld [vmem:[%s3 + $0x1e8] sm:$0xff]
  %v399 = vld [vmem:[%s3 + $0x1f0] sm:$0xff]
  %v400 = vld [vmem:[%s3 + $0x1f8] sm:$0xff]
  %v401 = vld [vmem:[%s3 + $0x200] sm:$0xff]
  %v402 = vld [vmem:[%s3 + $0x208] sm:$0xff]
  %v403 = vld [vmem:[%s3 + $0x210] sm:$0xff]
  %v404 = vld [vmem:[%s3 + $0x218] sm:$0xff]
  %v405 = vld [vmem:[%s3 + $0x220] sm:$0xff]
  %v406 = vld [vmem:[%s3 + $0x228] sm:$0xff]
  %v407 = vld [vmem:[%s3 + $0x230] sm:$0xff]
  %v408 = vld [vmem:[%s3 + $0x238] sm:$0xff]
  %v409 = vld [vmem:[%s3 + $0x240] sm:$0xff]
  %v410 = vld [vmem:[%s3 + $0x248] sm:$0xff]
  %v411 = vld [vmem:[%s3 + $0x250] sm:$0xff]
  %v412 = vld [vmem:[%s3 + $0x258] sm:$0xff]
  %v413 = vld [vmem:[%s3 + $0x260] sm:$0xff]
  %v414 = vld [vmem:[%s3 + $0x268] sm:$0xff]
  %v415 = vld [vmem:[%s3 + $0x270] sm:$0xff]
  %v416 = vld [vmem:[%s3 + $0x278] sm:$0xff]
  %v417 = vld [vmem:[%s3 + $0x280] sm:$0xff]
  %v418 = vld [vmem:[%s3 + $0x288] sm:$0xff]
  %v419 = vld [vmem:[%s3 + $0x290] sm:$0xff]
  %v420 = vld [vmem:[%s3 + $0x298] sm:$0xff]
  %v421 = vld [vmem:[%s3 + $0x2a0] sm:$0xff]
  %v422 = vld [vmem:[%s3 + $0x2a8] sm:$0xff]
  %v423 = vld [vmem:[%s3 + $0x2b0] sm:$0xff]
  %v424 = vld [vmem:[%s3 + $0x2b8] sm:$0xff]
  %v425 = vld [vmem:[%s3 + $0x2c0] sm:$0xff]
  %v426 = vld [vmem:[%s3 + $0x2c8] sm:$0xff]
  %v427 = vld [vmem:[%s3 + $0x2d0] sm:$0xff]
  %v428 = vld [vmem:[%s3 + $0x2d8] sm:$0xff]
  %v429 = vld [vmem:[%s3 + $0x2e0] sm:$0xff]
  %v430 = vld [vmem:[%s3 + $0x2e8] sm:$0xff]
  %v431 = vld [vmem:[%s3 + $0x2f0] sm:$0xff]
  %v432 = vld [vmem:[%s3 + $0x2f8] sm:$0xff]
  %v433 = vld [vmem:[%s3 + $0x300] sm:$0xff]
  %v434 = vld [vmem:[%s3 + $0x308] sm:$0xff]
  %v435 = vld [vmem:[%s3 + $0x310] sm:$0xff]
  %v436 = vld [vmem:[%s3 + $0x318] sm:$0xff]
  %v437 = vld [vmem:[%s3 + $0x320] sm:$0xff]
  %v438 = vld [vmem:[%s3 + $0x328] sm:$0xff]
  %v439 = vld [vmem:[%s3 + $0x330] sm:$0xff]
  %v440 = vld [vmem:[%s3 + $0x338] sm:$0xff]
  %v441 = vld [vmem:[%s3 + $0x340] sm:$0xff]
  %v442 = vld [vmem:[%s3 + $0x348] sm:$0xff]
  %v443 = vld [vmem:[%s3 + $0x350] sm:$0xff]
  %v444 = vld [vmem:[%s3 + $0x358] sm:$0xff]
  %v445 = vld [vmem:[%s3 + $0x360] sm:$0xff]
  %v446 = vld [vmem:[%s3 + $0x368] sm:$0xff]
  %v447 = vld [vmem:[%s3 + $0x370] sm:$0xff]
  %v448 = vld [vmem:[%s3 + $0x378] sm:$0xff]
  %v449 = vld [vmem:[%s3 + $0x380] sm:$0xff]
  %v450 = vld [vmem:[%s3 + $0x388] sm:$0xff]
  %v451 = vld [vmem:[%s3 + $0x390] sm:$0xff]
  %v452 = vld [vmem:[%s3 + $0x398] sm:$0xff]
  %v453 = vld [vmem:[%s3 + $0x3a0] sm:$0xff]
  %v454 = vld [vmem:[%s3 + $0x3a8] sm:$0xff]
  %v455 = vld [vmem:[%s3 + $0x3b0] sm:$0xff]
  %v456 = vld [vmem:[%s3 + $0x3b8] sm:$0xff]
  %v457 = vld [vmem:[%s3 + $0x3c0] sm:$0xff]
  %v458 = vld [vmem:[%s3 + $0x3c8] sm:$0xff]
  %v459 = vld [vmem:[%s3 + $0x3d0] sm:$0xff]
  %v460 = vld [vmem:[%s3 + $0x3d8] sm:$0xff]
  %v461 = vld [vmem:[%s3 + $0x3e0] sm:$0xff]
  %v462 = vld [vmem:[%s3 + $0x3e8] sm:$0xff]
  %v463 = vld [vmem:[%s3 + $0x3f0] sm:$0xff]
  %v464 = vld [vmem:[%s3 + $0x3f8] sm:$0xff]
  %v465 = vld [vmem:[%s4] sm:$0xf]
  %v467 = vlaneseq
  %v468 = vshrl.u32 %v467, 7
  %v469 = vsub.s32 0, %v468
  %v470 = vrot.slane %v465, %v469
  %v471 = vlaneseq
  %v472 = vshrl.u32 %v471, 7
  %v473 = vsub.s32 1, %v472
  %v474 = vrot.slane %v465, %v473
  %v475 = vlaneseq
  %v476 = vshrl.u32 %v475, 7
  %v477 = vsub.s32 2, %v476
  %v478 = vrot.slane %v465, %v477
  %v479 = vlaneseq
  %v480 = vshrl.u32 %v479, 7
  %v481 = vsub.s32 3, %v480
  %v482 = vrot.slane %v465, %v481
  %v615 = vunpack.c.l.b16 %v337
  %v616 = vunpack.c.h.b16 %v337
  %v617 = vunpack.c.l.b16 %v338
  %v618 = vunpack.c.h.b16 %v338
  %v619 = vunpack.c.l.b16 %v339
  %v620 = vunpack.c.h.b16 %v339
  %v621 = vunpack.c.l.b16 %v340
  %v622 = vunpack.c.h.b16 %v340
  %v623 = vunpack.c.l.b16 %v341
  %v624 = vunpack.c.h.b16 %v341
  %v625 = vunpack.c.l.b16 %v342
  %v626 = vunpack.c.h.b16 %v342
  %v627 = vunpack.c.l.b16 %v343
  %v628 = vunpack.c.h.b16 %v343
  %v629 = vunpack.c.l.b16 %v344
  %v630 = vunpack.c.h.b16 %v344
  %v631 = vunpack.c.l.b16 %v345
  %v632 = vunpack.c.h.b16 %v345
  %v633 = vunpack.c.l.b16 %v346
  %v634 = vunpack.c.h.b16 %v346
  %v635 = vunpack.c.l.b16 %v347
  %v636 = vunpack.c.h.b16 %v347
  %v637 = vunpack.c.l.b16 %v348
  %v638 = vunpack.c.h.b16 %v348
  %v639 = vunpack.c.l.b16 %v349
  %v640 = vunpack.c.h.b16 %v349
  %v641 = vunpack.c.l.b16 %v350
  %v642 = vunpack.c.h.b16 %v350
  %v643 = vunpack.c.l.b16 %v351
  %v644 = vunpack.c.h.b16 %v351
  %v645 = vunpack.c.l.b16 %v352
  %v646 = vunpack.c.h.b16 %v352
  %v647 = vunpack.c.l.b16 %v353
  %v648 = vunpack.c.h.b16 %v353
  %v649 = vunpack.c.l.b16 %v354
  %v650 = vunpack.c.h.b16 %v354
  %v651 = vunpack.c.l.b16 %v355
  %v652 = vunpack.c.h.b16 %v355
  %v653 = vunpack.c.l.b16 %v356
  %v654 = vunpack.c.h.b16 %v356
  %v655 = vunpack.c.l.b16 %v357
  %v656 = vunpack.c.h.b16 %v357
  %v657 = vunpack.c.l.b16 %v358
  %v658 = vunpack.c.h.b16 %v358
  %v659 = vunpack.c.l.b16 %v359
  %v660 = vunpack.c.h.b16 %v359
  %v661 = vunpack.c.l.b16 %v360
  %v662 = vunpack.c.h.b16 %v360
  %v663 = vunpack.c.l.b16 %v361
  %v664 = vunpack.c.h.b16 %v361
  %v665 = vunpack.c.l.b16 %v362
  %v666 = vunpack.c.h.b16 %v362
  %v667 = vunpack.c.l.b16 %v363
  %v668 = vunpack.c.h.b16 %v363
  %v669 = vunpack.c.l.b16 %v364
  %v670 = vunpack.c.h.b16 %v364
  %v671 = vunpack.c.l.b16 %v365
  %v672 = vunpack.c.h.b16 %v365
  %v673 = vunpack.c.l.b16 %v366
  %v674 = vunpack.c.h.b16 %v366
  %v675 = vunpack.c.l.b16 %v367
  %v676 = vunpack.c.h.b16 %v367
  %v677 = vunpack.c.l.b16 %v368
  %v678 = vunpack.c.h.b16 %v368
  %v679 = vunpack.c.l.b16 %v369
  %v680 = vunpack.c.h.b16 %v369
  %v681 = vunpack.c.l.b16 %v370
  %v682 = vunpack.c.h.b16 %v370
  %v683 = vunpack.c.l.b16 %v371
  %v684 = vunpack.c.h.b16 %v371
  %v685 = vunpack.c.l.b16 %v372
  %v686 = vunpack.c.h.b16 %v372
  %v687 = vunpack.c.l.b16 %v373
  %v688 = vunpack.c.h.b16 %v373
  %v689 = vunpack.c.l.b16 %v374
  %v690 = vunpack.c.h.b16 %v374
  %v691 = vunpack.c.l.b16 %v375
  %v692 = vunpack.c.h.b16 %v375
  %v693 = vunpack.c.l.b16 %v376
  %v694 = vunpack.c.h.b16 %v376
  %v695 = vunpack.c.l.b16 %v377
  %v696 = vunpack.c.h.b16 %v377
  %v697 = vunpack.c.l.b16 %v378
  %v698 = vunpack.c.h.b16 %v378
  %v699 = vunpack.c.l.b16 %v379
  %v700 = vunpack.c.h.b16 %v379
  %v701 = vunpack.c.l.b16 %v380
  %v702 = vunpack.c.h.b16 %v380
  %v703 = vunpack.c.l.b16 %v381
  %v704 = vunpack.c.h.b16 %v381
  %v705 = vunpack.c.l.b16 %v382
  %v706 = vunpack.c.h.b16 %v382
  %v707 = vunpack.c.l.b16 %v383
  %v708 = vunpack.c.h.b16 %v383
  %v709 = vunpack.c.l.b16 %v384
  %v710 = vunpack.c.h.b16 %v384
  %v711 = vunpack.c.l.b16 %v385
  %v712 = vunpack.c.h.b16 %v385
  %v713 = vunpack.c.l.b16 %v386
  %v714 = vunpack.c.h.b16 %v386
  %v715 = vunpack.c.l.b16 %v387
  %v716 = vunpack.c.h.b16 %v387
  %v717 = vunpack.c.l.b16 %v388
  %v718 = vunpack.c.h.b16 %v388
  %v719 = vunpack.c.l.b16 %v389
  %v720 = vunpack.c.h.b16 %v389
  %v721 = vunpack.c.l.b16 %v390
  %v722 = vunpack.c.h.b16 %v390
  %v723 = vunpack.c.l.b16 %v391
  %v724 = vunpack.c.h.b16 %v391
  %v725 = vunpack.c.l.b16 %v392
  %v726 = vunpack.c.h.b16 %v392
  %v727 = vunpack.c.l.b16 %v393
  %v728 = vunpack.c.h.b16 %v393
  %v729 = vunpack.c.l.b16 %v394
  %v730 = vunpack.c.h.b16 %v394
  %v731 = vunpack.c.l.b16 %v395
  %v732 = vunpack.c.h.b16 %v395
  %v733 = vunpack.c.l.b16 %v396
  %v734 = vunpack.c.h.b16 %v396
  %v735 = vunpack.c.l.b16 %v397
  %v736 = vunpack.c.h.b16 %v397
  %v737 = vunpack.c.l.b16 %v398
  %v738 = vunpack.c.h.b16 %v398
  %v739 = vunpack.c.l.b16 %v399
  %v740 = vunpack.c.h.b16 %v399
  %v741 = vunpack.c.l.b16 %v400
  %v742 = vunpack.c.h.b16 %v400
  %v743 = vunpack.c.l.b16 %v401
  %v744 = vunpack.c.h.b16 %v401
  %v745 = vunpack.c.l.b16 %v402
  %v746 = vunpack.c.h.b16 %v402
  %v747 = vunpack.c.l.b16 %v403
  %v748 = vunpack.c.h.b16 %v403
  %v749 = vunpack.c.l.b16 %v404
  %v750 = vunpack.c.h.b16 %v404
  %v751 = vunpack.c.l.b16 %v405
  %v752 = vunpack.c.h.b16 %v405
  %v753 = vunpack.c.l.b16 %v406
  %v754 = vunpack.c.h.b16 %v406
  %v755 = vunpack.c.l.b16 %v407
  %v756 = vunpack.c.h.b16 %v407
  %v757 = vunpack.c.l.b16 %v408
  %v758 = vunpack.c.h.b16 %v408
  %v759 = vunpack.c.l.b16 %v409
  %v760 = vunpack.c.h.b16 %v409
  %v761 = vunpack.c.l.b16 %v410
  %v762 = vunpack.c.h.b16 %v410
  %v763 = vunpack.c.l.b16 %v411
  %v764 = vunpack.c.h.b16 %v411
  %v765 = vunpack.c.l.b16 %v412
  %v766 = vunpack.c.h.b16 %v412
  %v767 = vunpack.c.l.b16 %v413
  %v768 = vunpack.c.h.b16 %v413
  %v769 = vunpack.c.l.b16 %v414
  %v770 = vunpack.c.h.b16 %v414
  %v771 = vunpack.c.l.b16 %v415
  %v772 = vunpack.c.h.b16 %v415
  %v773 = vunpack.c.l.b16 %v416
  %v774 = vunpack.c.h.b16 %v416
  %v775 = vunpack.c.l.b16 %v417
  %v776 = vunpack.c.h.b16 %v417
  %v777 = vunpack.c.l.b16 %v418
  %v778 = vunpack.c.h.b16 %v418
  %v779 = vunpack.c.l.b16 %v419
  %v780 = vunpack.c.h.b16 %v419
  %v781 = vunpack.c.l.b16 %v420
  %v782 = vunpack.c.h.b16 %v420
  %v783 = vunpack.c.l.b16 %v421
  %v784 = vunpack.c.h.b16 %v421
  %v785 = vunpack.c.l.b16 %v422
  %v786 = vunpack.c.h.b16 %v422
  %v787 = vunpack.c.l.b16 %v423
  %v788 = vunpack.c.h.b16 %v423
  %v789 = vunpack.c.l.b16 %v424
  %v790 = vunpack.c.h.b16 %v424
  %v791 = vunpack.c.l.b16 %v425
  %v792 = vunpack.c.h.b16 %v425
  %v793 = vunpack.c.l.b16 %v426
  %v794 = vunpack.c.h.b16 %v426
  %v795 = vunpack.c.l.b16 %v427
  %v796 = vunpack.c.h.b16 %v427
  %v797 = vunpack.c.l.b16 %v428
  %v798 = vunpack.c.h.b16 %v428
  %v799 = vunpack.c.l.b16 %v429
  %v800 = vunpack.c.h.b16 %v429
  %v801 = vunpack.c.l.b16 %v430
  %v802 = vunpack.c.h.b16 %v430
  %v803 = vunpack.c.l.b16 %v431
  %v804 = vunpack.c.h.b16 %v431
  %v805 = vunpack.c.l.b16 %v432
  %v806 = vunpack.c.h.b16 %v432
  %v807 = vunpack.c.l.b16 %v433
  %v808 = vunpack.c.h.b16 %v433
  %v809 = vunpack.c.l.b16 %v434
  %v810 = vunpack.c.h.b16 %v434
  %v811 = vunpack.c.l.b16 %v435
  %v812 = vunpack.c.h.b16 %v435
  %v813 = vunpack.c.l.b16 %v436
  %v814 = vunpack.c.h.b16 %v436
  %v815 = vunpack.c.l.b16 %v437
  %v816 = vunpack.c.h.b16 %v437
  %v817 = vunpack.c.l.b16 %v438
  %v818 = vunpack.c.h.b16 %v438
  %v819 = vunpack.c.l.b16 %v439
  %v820 = vunpack.c.h.b16 %v439
  %v821 = vunpack.c.l.b16 %v440
  %v822 = vunpack.c.h.b16 %v440
  %v823 = vunpack.c.l.b16 %v441
  %v824 = vunpack.c.h.b16 %v441
  %v825 = vunpack.c.l.b16 %v442
  %v826 = vunpack.c.h.b16 %v442
  %v827 = vunpack.c.l.b16 %v443
  %v828 = vunpack.c.h.b16 %v443
  %v829 = vunpack.c.l.b16 %v444
  %v830 = vunpack.c.h.b16 %v444
  %v831 = vunpack.c.l.b16 %v445
  %v832 = vunpack.c.h.b16 %v445
  %v833 = vunpack.c.l.b16 %v446
  %v834 = vunpack.c.h.b16 %v446
  %v835 = vunpack.c.l.b16 %v447
  %v836 = vunpack.c.h.b16 %v447
  %v837 = vunpack.c.l.b16 %v448
  %v838 = vunpack.c.h.b16 %v448
  %v839 = vunpack.c.l.b16 %v449
  %v840 = vunpack.c.h.b16 %v449
  %v841 = vunpack.c.l.b16 %v450
  %v842 = vunpack.c.h.b16 %v450
  %v843 = vunpack.c.l.b16 %v451
  %v844 = vunpack.c.h.b16 %v451
  %v845 = vunpack.c.l.b16 %v452
  %v846 = vunpack.c.h.b16 %v452
  %v847 = vunpack.c.l.b16 %v453
  %v848 = vunpack.c.h.b16 %v453
  %v849 = vunpack.c.l.b16 %v454
  %v850 = vunpack.c.h.b16 %v454
  %v851 = vunpack.c.l.b16 %v455
  %v852 = vunpack.c.h.b16 %v455
  %v853 = vunpack.c.l.b16 %v456
  %v854 = vunpack.c.h.b16 %v456
  %v855 = vunpack.c.l.b16 %v457
  %v856 = vunpack.c.h.b16 %v457
  %v857 = vunpack.c.l.b16 %v458
  %v858 = vunpack.c.h.b16 %v458
  %v859 = vunpack.c.l.b16 %v459
  %v860 = vunpack.c.h.b16 %v459
  %v861 = vunpack.c.l.b16 %v460
  %v862 = vunpack.c.h.b16 %v460
  %v863 = vunpack.c.l.b16 %v461
  %v864 = vunpack.c.h.b16 %v461
  %v865 = vunpack.c.l.b16 %v462
  %v866 = vunpack.c.h.b16 %v462
  %v867 = vunpack.c.l.b16 %v463
  %v868 = vunpack.c.h.b16 %v463
  %v869 = vunpack.c.l.b16 %v464
  %v870 = vunpack.c.h.b16 %v464
  %v871 = vpack.c.b16 %v619, %v615
  %v872 = vpack.c.b16 %v620, %v616
  %v873 = vpack.c.b16 %v621, %v617
  %v874 = vpack.c.b16 %v622, %v618
  %v875 = vpack.c.b16 %v627, %v623
  %v876 = vpack.c.b16 %v628, %v624
  %v877 = vpack.c.b16 %v629, %v625
  %v878 = vpack.c.b16 %v630, %v626
  %v879 = vpack.c.b16 %v635, %v631
  %v880 = vpack.c.b16 %v636, %v632
  %v881 = vpack.c.b16 %v637, %v633
  %v882 = vpack.c.b16 %v638, %v634
  %v883 = vpack.c.b16 %v643, %v639
  %v884 = vpack.c.b16 %v644, %v640
  %v885 = vpack.c.b16 %v645, %v641
  %v886 = vpack.c.b16 %v646, %v642
  %v887 = vpack.c.b16 %v651, %v647
  %v888 = vpack.c.b16 %v652, %v648
  %v889 = vpack.c.b16 %v653, %v649
  %v890 = vpack.c.b16 %v654, %v650
  %v891 = vpack.c.b16 %v659, %v655
  %v892 = vpack.c.b16 %v660, %v656
  %v893 = vpack.c.b16 %v661, %v657
  %v894 = vpack.c.b16 %v662, %v658
  %v895 = vpack.c.b16 %v667, %v663
  %v896 = vpack.c.b16 %v668, %v664
  %v897 = vpack.c.b16 %v669, %v665
  %v898 = vpack.c.b16 %v670, %v666
  %v899 = vpack.c.b16 %v675, %v671
  %v900 = vpack.c.b16 %v676, %v672
  %v901 = vpack.c.b16 %v677, %v673
  %v902 = vpack.c.b16 %v678, %v674
  %v903 = vpack.c.b16 %v683, %v679
  %v904 = vpack.c.b16 %v684, %v680
  %v905 = vpack.c.b16 %v685, %v681
  %v906 = vpack.c.b16 %v686, %v682
  %v907 = vpack.c.b16 %v691, %v687
  %v908 = vpack.c.b16 %v692, %v688
  %v909 = vpack.c.b16 %v693, %v689
  %v910 = vpack.c.b16 %v694, %v690
  %v911 = vpack.c.b16 %v699, %v695
  %v912 = vpack.c.b16 %v700, %v696
  %v913 = vpack.c.b16 %v701, %v697
  %v914 = vpack.c.b16 %v702, %v698
  %v915 = vpack.c.b16 %v707, %v703
  %v916 = vpack.c.b16 %v708, %v704
  %v917 = vpack.c.b16 %v709, %v705
  %v918 = vpack.c.b16 %v710, %v706
  %v919 = vpack.c.b16 %v715, %v711
  %v920 = vpack.c.b16 %v716, %v712
  %v921 = vpack.c.b16 %v717, %v713
  %v922 = vpack.c.b16 %v718, %v714
  %v923 = vpack.c.b16 %v723, %v719
  %v924 = vpack.c.b16 %v724, %v720
  %v925 = vpack.c.b16 %v725, %v721
  %v926 = vpack.c.b16 %v726, %v722
  %v927 = vpack.c.b16 %v731, %v727
  %v928 = vpack.c.b16 %v732, %v728
  %v929 = vpack.c.b16 %v733, %v729
  %v930 = vpack.c.b16 %v734, %v730
  %v931 = vpack.c.b16 %v739, %v735
  %v932 = vpack.c.b16 %v740, %v736
  %v933 = vpack.c.b16 %v741, %v737
  %v934 = vpack.c.b16 %v742, %v738
  %v935 = vpack.c.b16 %v747, %v743
  %v936 = vpack.c.b16 %v748, %v744
  %v937 = vpack.c.b16 %v749, %v745
  %v938 = vpack.c.b16 %v750, %v746
  %v939 = vpack.c.b16 %v755, %v751
  %v940 = vpack.c.b16 %v756, %v752
  %v941 = vpack.c.b16 %v757, %v753
  %v942 = vpack.c.b16 %v758, %v754
  %v943 = vpack.c.b16 %v763, %v759
  %v944 = vpack.c.b16 %v764, %v760
  %v945 = vpack.c.b16 %v765, %v761
  %v946 = vpack.c.b16 %v766, %v762
  %v947 = vpack.c.b16 %v771, %v767
  %v948 = vpack.c.b16 %v772, %v768
  %v949 = vpack.c.b16 %v773, %v769
  %v950 = vpack.c.b16 %v774, %v770
  %v951 = vpack.c.b16 %v779, %v775
  %v952 = vpack.c.b16 %v780, %v776
  %v953 = vpack.c.b16 %v781, %v777
  %v954 = vpack.c.b16 %v782, %v778
  %v955 = vpack.c.b16 %v787, %v783
  %v956 = vpack.c.b16 %v788, %v784
  %v957 = vpack.c.b16 %v789, %v785
  %v958 = vpack.c.b16 %v790, %v786
  %v959 = vpack.c.b16 %v795, %v791
  %v960 = vpack.c.b16 %v796, %v792
  %v961 = vpack.c.b16 %v797, %v793
  %v962 = vpack.c.b16 %v798, %v794
  %v963 = vpack.c.b16 %v803, %v799
  %v964 = vpack.c.b16 %v804, %v800
  %v965 = vpack.c.b16 %v805, %v801
  %v966 = vpack.c.b16 %v806, %v802
  %v967 = vpack.c.b16 %v811, %v807
  %v968 = vpack.c.b16 %v812, %v808
  %v969 = vpack.c.b16 %v813, %v809
  %v970 = vpack.c.b16 %v814, %v810
  %v971 = vpack.c.b16 %v819, %v815
  %v972 = vpack.c.b16 %v820, %v816
  %v973 = vpack.c.b16 %v821, %v817
  %v974 = vpack.c.b16 %v822, %v818
  %v975 = vpack.c.b16 %v827, %v823
  %v976 = vpack.c.b16 %v828, %v824
  %v977 = vpack.c.b16 %v829, %v825
  %v978 = vpack.c.b16 %v830, %v826
  %v979 = vpack.c.b16 %v835, %v831
  %v980 = vpack.c.b16 %v836, %v832
  %v981 = vpack.c.b16 %v837, %v833
  %v982 = vpack.c.b16 %v838, %v834
  %v983 = vpack.c.b16 %v843, %v839
  %v984 = vpack.c.b16 %v844, %v840
  %v985 = vpack.c.b16 %v845, %v841
  %v986 = vpack.c.b16 %v846, %v842
  %v987 = vpack.c.b16 %v851, %v847
  %v988 = vpack.c.b16 %v852, %v848
  %v989 = vpack.c.b16 %v853, %v849
  %v990 = vpack.c.b16 %v854, %v850
  %v991 = vpack.c.b16 %v859, %v855
  %v992 = vpack.c.b16 %v860, %v856
  %v993 = vpack.c.b16 %v861, %v857
  %v994 = vpack.c.b16 %v862, %v858
  %v995 = vpack.c.b16 %v867, %v863
  %v996 = vpack.c.b16 %v868, %v864
  %v997 = vpack.c.b16 %v869, %v865
  %v998 = vpack.c.b16 %v870, %v866
  %1127 = vmatprep.subr.bf16.mxu0 %v900
  %1128 = vmatpush1.bf16.msra.mxu0 %v899
  %1129 = vmatprep.subr.bf16.mxu0 %v896
  %1130 = vmatpush1.bf16.msra.mxu0 %v895
  %1131 = vmatprep.subr.bf16.mxu0 %v892
  %1132 = vmatpush1.bf16.msra.mxu0 %v891
  %1133 = vmatprep.subr.bf16.mxu0 %v888
  %1134 = vmatpush1.bf16.msra.mxu0 %v887
  %1135 = vmatprep.subr.bf16.mxu0 %v884
  %1136 = vmatpush1.bf16.msra.mxu0 %v883
  %1137 = vmatprep.subr.bf16.mxu0 %v880
  %1138 = vmatpush1.bf16.msra.mxu0 %v879
  %1139 = vmatprep.subr.bf16.mxu0 %v876
  %1140 = vmatpush1.bf16.msra.mxu0 %v875
  %1141 = vmatprep.subr.bf16.mxu0 %v872
  %1142 = vmatpush1.bf16.msra.mxu0 %v871
  %1143 = vmatprep.subr.bf16.mxu0 %v932
  %1144 = vmatpush2.bf16.msra.mxu0 %v931
  %1145 = vmatprep.subr.bf16.mxu0 %v928
  %1146 = vmatpush2.bf16.msra.mxu0 %v927
  %1147 = vmatprep.subr.bf16.mxu0 %v924
  %1148 = vmatpush2.bf16.msra.mxu0 %v923
  %1149 = vmatprep.subr.bf16.mxu0 %v920
  %1150 = vmatpush2.bf16.msra.mxu0 %v919
  %1151 = vmatprep.subr.bf16.mxu0 %v916
  %1152 = vmatpush2.bf16.msra.mxu0 %v915
  %1153 = vmatprep.subr.bf16.mxu0 %v912
  %1154 = vmatpush2.bf16.msra.mxu0 %v911
  %1155 = vmatprep.subr.bf16.mxu0 %v908
  %1156 = vmatpush2.bf16.msra.mxu0 %v907
  %1157 = vmatprep.subr.bf16.mxu0 %v904
  %1158 = vmatpush2.bf16.msra.mxu0 %v903
  %1159 = vmatprep.mubr.bf16.mxu0 %v334
  %1160 = vmatmul.mubr.bf16.gmra.mxu0 %v333
  %v1161 = vpop.f32.mrf.mxu0
  %v1162 = vadd.f32 %v470, %v1161
  %v1163 = vpop.f32.mrf.mxu0
  %v1164 = vadd.f32 %v474, %v1163
  %v1165 = vpop.f32.mrf.mxu0
  %v1166 = vadd.f32 %v470, %v1165
  %v1167 = vpop.f32.mrf.mxu0
  %v1168 = vadd.f32 %v474, %v1167
  %1169 = vdwg.mxu0
  %1170 = vmatprep.subr.bf16.mxu0 %v964
  %1171 = vmatpush1.bf16.msra.mxu0 %v963
  %1172 = vmatprep.subr.bf16.mxu0 %v960
  %1173 = vmatpush1.bf16.msra.mxu0 %v959
  %1174 = vmatprep.subr.bf16.mxu0 %v956
  %1175 = vmatpush1.bf16.msra.mxu0 %v955
  %1176 = vmatprep.subr.bf16.mxu0 %v952
  %1177 = vmatpush1.bf16.msra.mxu0 %v951
  %1178 = vmatprep.subr.bf16.mxu0 %v948
  %1179 = vmatpush1.bf16.msra.mxu0 %v947
  %1180 = vmatprep.subr.bf16.mxu0 %v944
  %1181 = vmatpush1.bf16.msra.mxu0 %v943
  %1182 = vmatprep.subr.bf16.mxu0 %v940
  %1183 = vmatpush1.bf16.msra.mxu0 %v939
  %1184 = vmatprep.subr.bf16.mxu0 %v936
  %1185 = vmatpush1.bf16.msra.mxu0 %v935
  %1186 = vmatprep.subr.bf16.mxu0 %v996
  %1187 = vmatpush2.bf16.msra.mxu0 %v995
  %1188 = vmatprep.subr.bf16.mxu0 %v992
  %1189 = vmatpush2.bf16.msra.mxu0 %v991
  %1190 = vmatprep.subr.bf16.mxu0 %v988
  %1191 = vmatpush2.bf16.msra.mxu0 %v987
  %1192 = vmatprep.subr.bf16.mxu0 %v984
  %1193 = vmatpush2.bf16.msra.mxu0 %v983
  %1194 = vmatprep.subr.bf16.mxu0 %v980
  %1195 = vmatpush2.bf16.msra.mxu0 %v979
  %1196 = vmatprep.subr.bf16.mxu0 %v976
  %1197 = vmatpush2.bf16.msra.mxu0 %v975
  %1198 = vmatprep.subr.bf16.mxu0 %v972
  %1199 = vmatpush2.bf16.msra.mxu0 %v971
  %1200 = vmatprep.subr.bf16.mxu0 %v968
  %1201 = vmatpush2.bf16.msra.mxu0 %v967
  %1202 = vmatprep.mubr.bf16.mxu0 %v336
  %1203 = vmatmul.mubr.bf16.gmra.mxu0 %v335
  %v1204 = vpop.f32.mrf.mxu0
  %v1205 = vadd.f32 %v1162, %v1204
  %v1206 = vpop.f32.mrf.mxu0
  %v1207 = vadd.f32 %v1164, %v1206
  %v1208 = vpop.f32.mrf.mxu0
  %v1209 = vadd.f32 %v1166, %v1208
  %v1210 = vpop.f32.mrf.mxu0
  %v1211 = vadd.f32 %v1168, %v1210
  %1212 = vdwg.mxu0
  %1213 = vmatprep.subr.bf16.mxu0 %v902
  %1214 = vmatpush1.bf16.msra.mxu0 %v901
  %1215 = vmatprep.subr.bf16.mxu0 %v898
  %1216 = vmatpush1.bf16.msra.mxu0 %v897
  %1217 = vmatprep.subr.bf16.mxu0 %v894
  %1218 = vmatpush1.bf16.msra.mxu0 %v893
  %1219 = vmatprep.subr.bf16.mxu0 %v890
  %1220 = vmatpush1.bf16.msra.mxu0 %v889
  %1221 = vmatprep.subr.bf16.mxu0 %v886
  %1222 = vmatpush1.bf16.msra.mxu0 %v885
  %1223 = vmatprep.subr.bf16.mxu0 %v882
  %1224 = vmatpush1.bf16.msra.mxu0 %v881
  %1225 = vmatprep.subr.bf16.mxu0 %v878
  %1226 = vmatpush1.bf16.msra.mxu0 %v877
  %1227 = vmatprep.subr.bf16.mxu0 %v874
  %1228 = vmatpush1.bf16.msra.mxu0 %v873
  %1229 = vmatprep.subr.bf16.mxu0 %v934
  %1230 = vmatpush2.bf16.msra.mxu0 %v933
  %1231 = vmatprep.subr.bf16.mxu0 %v930
  %1232 = vmatpush2.bf16.msra.mxu0 %v929
  %1233 = vmatprep.subr.bf16.mxu0 %v926
  %1234 = vmatpush2.bf16.msra.mxu0 %v925
  %1235 = vmatprep.subr.bf16.mxu0 %v922
  %1236 = vmatpush2.bf16.msra.mxu0 %v921
  %1237 = vmatprep.subr.bf16.mxu0 %v918
  %1238 = vmatpush2.bf16.msra.mxu0 %v917
  %1239 = vmatprep.subr.bf16.mxu0 %v914
  %1240 = vmatpush2.bf16.msra.mxu0 %v913
  %1241 = vmatprep.subr.bf16.mxu0 %v910
  %1242 = vmatpush2.bf16.msra.mxu0 %v909
  %1243 = vmatprep.subr.bf16.mxu0 %v906
  %1244 = vmatpush2.bf16.msra.mxu0 %v905
  %1245 = vmatprep.mubr.bf16.mxu0 %v334
  %1246 = vmatmul.mubr.bf16.gmra.mxu0 %v333
  %v1247 = vpop.f32.mrf.mxu0
  %v1248 = vadd.f32 %v478, %v1247
  %v1249 = vpop.f32.mrf.mxu0
  %v1250 = vadd.f32 %v482, %v1249
  %v1251 = vpop.f32.mrf.mxu0
  %v1252 = vadd.f32 %v478, %v1251
  %v1253 = vpop.f32.mrf.mxu0
  %v1254 = vadd.f32 %v482, %v1253
  %1255 = vdwg.mxu0
  %1256 = vmatprep.subr.bf16.mxu0 %v966
  %1257 = vmatpush1.bf16.msra.mxu0 %v965
  %1258 = vmatprep.subr.bf16.mxu0 %v962
  %1259 = vmatpush1.bf16.msra.mxu0 %v961
  %1260 = vmatprep.subr.bf16.mxu0 %v958
  %1261 = vmatpush1.bf16.msra.mxu0 %v957
  %1262 = vmatprep.subr.bf16.mxu0 %v954
  %1263 = vmatpush1.bf16.msra.mxu0 %v953
  %1264 = vmatprep.subr.bf16.mxu0 %v950
  %1265 = vmatpush1.bf16.msra.mxu0 %v949
  %1266 = vmatprep.subr.bf16.mxu0 %v946
  %1267 = vmatpush1.bf16.msra.mxu0 %v945
  %1268 = vmatprep.subr.bf16.mxu0 %v942
  %1269 = vmatpush1.bf16.msra.mxu0 %v941
  %1270 = vmatprep.subr.bf16.mxu0 %v938
  %1271 = vmatpush1.bf16.msra.mxu0 %v937
  %1272 = vmatprep.subr.bf16.mxu0 %v998
  %1273 = vmatpush2.bf16.msra.mxu0 %v997
  %1274 = vmatprep.subr.bf16.mxu0 %v994
  %1275 = vmatpush2.bf16.msra.mxu0 %v993
  %1276 = vmatprep.subr.bf16.mxu0 %v990
  %1277 = vmatpush2.bf16.msra.mxu0 %v989
  %1278 = vmatprep.subr.bf16.mxu0 %v986
  %1279 = vmatpush2.bf16.msra.mxu0 %v985
  %1280 = vmatprep.subr.bf16.mxu0 %v982
  %1281 = vmatpush2.bf16.msra.mxu0 %v981
  %1282 = vmatprep.subr.bf16.mxu0 %v978
  %1283 = vmatpush2.bf16.msra.mxu0 %v977
  %1284 = vmatprep.subr.bf16.mxu0 %v974
  %1285 = vmatpush2.bf16.msra.mxu0 %v973
  %1286 = vmatprep.subr.bf16.mxu0 %v970
  %1287 = vmatpush2.bf16.msra.mxu0 %v969
  %1288 = vmatprep.mubr.bf16.mxu0 %v336
  %1289 = vmatmul.mubr.bf16.gmra.mxu0 %v335
  %v1290 = vpop.f32.mrf.mxu0
  %v1291 = vadd.f32 %v1248, %v1290
  %v1292 = vpop.f32.mrf.mxu0
  %v1293 = vadd.f32 %v1250, %v1292
  %v1294 = vpop.f32.mrf.mxu0
  %v1295 = vadd.f32 %v1252, %v1294
  %v1296 = vpop.f32.mrf.mxu0
  %v1297 = vadd.f32 %v1254, %v1296
  %1298 = vdwg.mxu0
  %v1299 = vmax.f32 %v1205, 0.0
  %v1300 = vmax.f32 %v1207, 0.0
  %v1301 = vmax.f32 %v1291, 0.0
  %v1302 = vmax.f32 %v1293, 0.0
  %v1303 = vmax.f32 %v1209, 0.0
  %v1304 = vmax.f32 %v1211, 0.0
  %v1305 = vmax.f32 %v1295, 0.0
  %v1306 = vmax.f32 %v1297, 0.0
  %v1307 = vld [vmem:[%s5] sm:$0xf]
  %v1308 = vunpack.c.l.bf16 %v1307
  %v1310 = vlaneseq
  %v1311 = vshrl.u32 %v1310, 7
  %v1312 = vsub.s32 0, %v1311
  %v1313 = vrot.slane %v1308, %v1312
  %v1314 = vlaneseq
  %v1315 = vshrl.u32 %v1314, 7
  %v1316 = vsub.s32 2, %v1315
  %v1317 = vrot.slane %v1308, %v1316
  %v1318 = vlaneseq
  %v1319 = vshrl.u32 %v1318, 7
  %v1320 = vsub.s32 4, %v1319
  %v1321 = vrot.slane %v1308, %v1320
  %v1322 = vlaneseq
  %v1323 = vshrl.u32 %v1322, 7
  %v1324 = vsub.s32 6, %v1323
  %v1325 = vrot.slane %v1308, %v1324
  %v1330 = vlaneseq
  %v1331 = vshrl.u32 %v1330, 7
  %v1332 = vsub.s32 0, %v1331
  %v1333 = vrot.slane %v1313, %v1332
  %v1334 = vlaneseq
  %v1335 = vshrl.u32 %v1334, 7
  %v1336 = vsub.s32 0, %v1335
  %v1337 = vrot.slane %v1317, %v1336
  %v1338 = vlaneseq
  %v1339 = vshrl.u32 %v1338, 7
  %v1340 = vsub.s32 0, %v1339
  %v1341 = vrot.slane %v1321, %v1340
  %v1342 = vlaneseq
  %v1343 = vshrl.u32 %v1342, 7
  %v1344 = vsub.s32 0, %v1343
  %v1345 = vrot.slane %v1325, %v1344
  %v1346 = vmul.f32 %v1299, %v1333
  %v1347 = vmul.f32 %v1300, %v1337
  %v1348 = vmul.f32 %v1301, %v1341
  %v1349 = vmul.f32 %v1302, %v1345
  %v1350 = vmul.f32 %v1303, %v1333
  %v1351 = vmul.f32 %v1304, %v1337
  %v1352 = vmul.f32 %v1305, %v1341
  %v1353 = vmul.f32 %v1306, %v1345
  %v1354 = vadd.f32 %v1346, %v1347
  %v1355 = vadd.f32 %v1354, %v1348
  %v1356 = vadd.f32 %v1355, %v1349
  %1357 = vadd.xlane.f32.xlu0 %v1356
  %v1358 = vpop.xlane.xlu0 %1357
  %v1359 = vadd.f32 %v1350, %v1351
  %v1360 = vadd.f32 %v1359, %v1352
  %v1361 = vadd.f32 %v1360, %v1353
  %1362 = vadd.xlane.f32.xlu0 %v1361
  %v1363 = vpop.xlane.xlu0 %1362
  %v1364 = vld [vmem:[#allocation2] sm:$0x1]
  %v1366 = vlaneseq
  %v1367 = vshrl.u32 %v1366, 7
  %v1368 = vsub.s32 0, %v1367
  %v1369 = vrot.slane %v1364, %v1368
  %v1371 = vadd.f32 %v1358, %v1369
  %v1372 = vadd.f32 %v1363, %v1369
  %v1373 = vand.u32 2147483647, %v1371
  %v1374 = vand.u32 2147483647, %v1372
  %v1375 = vsub.f32 0.0, %v1373
  %v1376 = vsub.f32 0.0, %v1374
  %v1377 = vmul.f32 %v1375, 1.442695
  %v1378 = vpow.pop %v1377
  %v1379 = vmul.f32 %v1376, 1.442695
  %v1380 = vpow.pop %v1379
  %v1381 = vadd.f32 %v1378, 1.0
  %v1382 = vadd.f32 %v1380, 1.0
  %v1383 = vrcp.pop %v1381
  %v1384 = vrcp.pop %v1382
  %vm1385 = vcmp.ge.f32.partialorder %v1371, 0.0
  %vm1386 = vcmp.ge.f32.partialorder %v1372, 0.0
  %v1387 = vsub.f32 1.0, %v1383
  %v1388 = vsub.f32 1.0, %v1384
  %v1389 = vsel %vm1385, %v1383, %v1387
  %v1390 = vsel %vm1386, %v1384, %v1388
  %vm1391 = vcmask 7168
  %1392 = vst.msk [vmem:[%s7] sm:$0xff] %vm1391, %v1389
  %1393 = vst.msk [vmem:[%s7 + $0x8] sm:$0xff] %vm1391, %v1390
  // Predicated region
  $region30: #{starting_network_forward.1} parent=0 // pred_check
    _
  $region31: #{starting_network_forward.1} parent=0 // pred_check_branch
    %1395 = sbr.rel (0) target = $region33
  $region32: #{starting_network_forward.1} parent=0 // pred_region
    _
  $region33: #{starting_network_forward.1} parent=0 // pred_fallthru
    _
  // Predicated region
  $region34: #{starting_network_forward.1} parent=0 // pred_check
    _
  $region35: #{starting_network_forward.1} parent=0 // pred_check_branch
    %1397 = sbr.rel (0) target = $region37
  $region36: #{starting_network_forward.1} parent=0 // pred_region
    _
  $region37: #{starting_network_forward.1} parent=0 // pred_fallthru
    _

</llo_original>
